<compile_context>
chip_gen: v7x
topology: tpu7x:2x2x1
jax: 0.10.0
libtpu: 0.0.40
codegen_flags: <defaults>
</compile_context>

<pallas_src>
import functools

import numpy as np

import jax
import jax.numpy as jnp
from jax import lax
from jax.experimental import pallas as pl
from jax.experimental.pallas import tpu as pltpu


def _round_up(x: int, m: int) -> int:
    return -(-x // m) * m


def _vmem_capacity_bytes() -> int:
    """Per-generation VMEM capacity; conservative fallback if query fails."""
    try:
        return int(pltpu.get_tpu_info().vmem_capacity_bytes)
    except Exception:
        return 64 * 1024 * 1024     # v7x-sized: safe on v5e/v6e/v7x


def _choose_tiling(rows_total: int, bytes_per_row: int, vmem_cap: int,
                   target_rows: int, chunk_rows: int):
    """Pick (tile_rows, chunk_rows, n_chunks).

    Tiled blocks are multiples of 8 sublanes and never exceed rows_total
    (a non-multiple-of-8 tile is only used as a single full-extent block).
    """
    chunk_rows = max(8, (chunk_rows // 8) * 8)
    # ~2/3 of VMEM for the double-buffered in/out blocks, rest is headroom
    # for the constant matrices, stack and compiler-internal scratch.
    budget = (2 * vmem_cap) // 3
    max_rows = max(8, (budget // bytes_per_row) // 8 * 8)
    tile = min(_round_up(max(target_rows, 8), 8), max_rows)

    if tile >= rows_total:
        if rows_total >= 2 * chunk_rows:
            # Big enough: force >= 2 grid steps so both v7x TCs get work.
            tile = _round_up(rows_total // 2, chunk_rows)   # <= rows_total here
        else:
            # Tiny problem: one full-extent block, one chunk.
            return rows_total, rows_total, 1

    if tile >= chunk_rows:
        tile = (tile // chunk_rows) * chunk_rows
        return tile, chunk_rows, tile // chunk_rows
    # VMEM budget forced a tile smaller than the requested chunk size.
    return tile, tile, 1


def _mean_vfe_kernel(vox_ref, cnt_ref, sum_mat_ref, exp_mat_ref, out_ref,
                     *, chunk_rows: int, n_chunks: int):
    """One grid step = n_chunks * chunk_rows folded rows (G voxels per row).

    vox_ref     : (tile_rows, G*P*C)  point features
    cnt_ref     : (tile_rows, G)      valid-point counts
    sum_mat_ref : (G*P*C, G*C) f32    one-hot "sum over P + compact" matrix
    exp_mat_ref : (G, G*C)     bf16   one-hot count-expansion matrix
    out_ref     : (tile_rows, G*C)    per-voxel mean features
    """

    def process(r0):
        x = vox_ref[pl.ds(r0, chunk_rows), :].astype(jnp.float32)
        # Sum over the P points of each voxel AND compact to (.., G*C):
        # one MXU matmul against a constant one-hot matrix (XLU-free).
        sums = jnp.dot(x, sum_mat_ref[...],
                       preferred_element_type=jnp.float32,
                       precision=lax.Precision.HIGHEST)
        # Expand counts (.., G) -> (.., G*C).  Counts are small integers, so
        # a single-pass bf16 MXU matmul is exact.
        cnt = (cnt_ref[pl.ds(r0, chunk_rows), :]
               .astype(jnp.float32).astype(jnp.bfloat16))
        norm = jnp.maximum(
            jnp.dot(cnt, exp_mat_ref[...], preferred_element_type=jnp.float32),
            1.0)
        out_ref[pl.ds(r0, chunk_rows), :] = (sums / norm).astype(out_ref.dtype)

    if n_chunks == 1:
        process(0)
    else:
        def body(i, carry):
            process(pl.multiple_of(i * chunk_rows, chunk_rows))
            return carry
        lax.fori_loop(0, n_chunks, body, 0)


def mean_vfe(voxel_features: jax.Array, voxel_num_points: jax.Array, *,
             target_voxels_per_step: int = 16384,
             chunk_rows: int = 512) -> jax.Array:
    """voxel_features: (N, P, C); voxel_num_points: (N,) int or float.
    Returns (N, C) mean features, matching MeanVFE.forward."""
    N, P, C = voxel_features.shape
    feat_dtype = voxel_features.dtype

    # ---- fold G voxels per row (free, row-major-contiguous reshapes) ----
    pc = P * C
    g = max(1, 128 // pc)
    while N % g:                      # fall back to the largest divisor of N
        g -= 1
    rows = N // g
    gpc, gc = g * pc, g * C

    vox2d = voxel_features.reshape(rows, gpc)
    cnt2d = voxel_num_points.reshape(rows, g)

    # Constant one-hot matrices (tiny; built once at trace time).
    #   sum_mat[g0*P*C + p*C + c, g0*C + c] = 1   (sum over p, compact layout)
    #   exp_mat[g0, g0*C + c]               = 1   (repeat each count C times)
    sum_mat = jnp.asarray(
        np.kron(np.eye(g, dtype=np.float32),
                np.kron(np.ones((P, 1), np.float32),
                        np.eye(C, dtype=np.float32))))
    exp_mat = jnp.asarray(
        np.kron(np.eye(g, dtype=np.float32), np.ones((1, C), np.float32)),
        dtype=jnp.bfloat16)

    # ---- tiling from the *lane-padded* VMEM footprint ----
    def lane_pad_bytes(lanes, itemsize):
        return _round_up(lanes, 128) * itemsize

    vox_item = np.dtype(feat_dtype).itemsize
    cnt_item = np.dtype(cnt2d.dtype).itemsize
    bytes_per_row = 2 * (lane_pad_bytes(gpc, vox_item)       # double-buffered
                         + lane_pad_bytes(g, cnt_item)
                         + lane_pad_bytes(gc, vox_item))

    vmem_cap = _vmem_capacity_bytes()
    target_rows = max(8, target_voxels_per_step // g)
    tile_rows, chunk, n_chunks = _choose_tiling(
        rows, bytes_per_row, vmem_cap, target_rows, chunk_rows)

    const_bytes = (2 * _round_up(gpc, 8) * _round_up(gc, 128) * 4
                   + 2 * _round_up(g, 8) * _round_up(gc, 128) * 2)
    vmem_need = tile_rows * bytes_per_row + const_bytes + (2 << 20)
    vmem_limit = int(min(0.9 * vmem_cap, max(32 << 20, vmem_need + (4 << 20))))
    vmem_limit = max(vmem_limit, vmem_need)

    grid = (pl.cdiv(rows, tile_rows),)   # partial last block is masked on write
    kernel = functools.partial(_mean_vfe_kernel,
                               chunk_rows=chunk, n_chunks=n_chunks)

    out2d = pl.pallas_call(
        kernel,
        out_shape=jax.ShapeDtypeStruct((rows, gc), feat_dtype),
        grid_spec=pl.GridSpec(
            grid=grid,
            in_specs=[
                pl.BlockSpec((tile_rows, gpc), lambda i: (i, 0)),
                pl.BlockSpec((tile_rows, g), lambda i: (i, 0)),
                pl.BlockSpec((gpc, gc), lambda i: (0, 0)),   # resident constant
                pl.BlockSpec((g, gc), lambda i: (0, 0)),     # resident constant
            ],
            out_specs=pl.BlockSpec((tile_rows, gc), lambda i: (i, 0)),
        ),
        compiler_params=pltpu.CompilerParams(
            # Shards grid steps across both TensorCores on v7x; measured no-op
            # on single-TC v5e/v6e.
            dimension_semantics=("parallel",),
            vmem_limit_bytes=vmem_limit),
    )(vox2d, cnt2d, sum_mat, exp_mat)

    # Free reshape back to the module's (N, C) output.
    return out2d.reshape(N, C)


def mean_vfe_ref(voxel_features, voxel_num_points):
    pts_sum = jnp.sum(voxel_features.astype(jnp.float32), axis=1)
    normalizer = jnp.maximum(
        voxel_num_points.reshape(-1, 1).astype(jnp.float32), 1.0)
    return (pts_sum / normalizer).astype(voxel_features.dtype)


if __name__ == "__main__":
    # MeanVFE has no learnable parameters; nothing to initialize.
    key = jax.random.PRNGKey(0)
    k1, k2 = jax.random.split(key)

    # (num_voxels, max_points_per_voxel, num_point_features)
    N, P, C = 100, 8, 4
    voxel_features = jax.random.normal(k1, (N, P, C), dtype=jnp.float32)
    voxel_num_points = jax.random.randint(k2, (N,), 0, P + 1, dtype=jnp.int32)

    ref = mean_vfe_ref(voxel_features, voxel_num_points)

    # Default path: folded lane-dense layout, single (full-extent) grid step.
    out = jax.block_until_ready(mean_vfe(voxel_features, voxel_num_points))
    assert out.shape == (N, C)
    assert jnp.allclose(out, ref, atol=1e-4, rtol=1e-4), "mismatch vs reference"

    # Force the tiled / chunked path: 2 grid steps x 2 in-kernel chunks, with a
    # partial (masked) last block.
    out_tiled = jax.block_until_ready(
        mean_vfe(voxel_features, voxel_num_points,
                 target_voxels_per_step=64, chunk_rows=8))
    assert jnp.allclose(out_tiled, ref, atol=1e-4, rtol=1e-4), \
        "mismatch vs reference (tiled path)"

    print("KERNEL_OK")
</pallas_src>

<mosaic_0001>
module attributes {stable_mosaic.version = 11 : i64} {
  func.func @_mean_vfe_kernel(%arg0: i32, %arg1: memref<25x128xf32, #tpu.memory_space<vmem>>, %arg2: memref<25x4xi32, #tpu.memory_space<vmem>>, %arg3: memref<128x16xf32, #tpu.memory_space<vmem>>, %arg4: memref<4x16xbf16, #tpu.memory_space<vmem>>, %arg5: memref<25x16xf32, #tpu.memory_space<vmem>>) attributes {dimension_semantics = [#tpu.dimension_semantics<parallel>], iteration_bounds = array<i64: 1>, scalar_prefetch = 0 : i64, scratch_operands = 0 : i64, tpu.core_type = #tpu.core_type<tc>, window_params = [{transform_indices = @transform_0, window_bounds = array<i64: 25, 128>}, {transform_indices = @transform_1, window_bounds = array<i64: 25, 4>}, {pipeline_mode = #tpu.pipeline_mode<synchronous>, transform_indices = @transform_2, window_bounds = array<i64: 128, 16>}, {pipeline_mode = #tpu.pipeline_mode<synchronous>, transform_indices = @transform_3, window_bounds = array<i64: 4, 16>}, {transform_indices = @transform_4, window_bounds = array<i64: 25, 16>}]} {
    %c0 = arith.constant 0 : index
    %c0_0 = arith.constant 0 : index
    %0 = vector.load %arg1[%c0, %c0_0] : memref<25x128xf32, #tpu.memory_space<vmem>>, vector<25x128xf32>
    %c0_1 = arith.constant 0 : index
    %c0_2 = arith.constant 0 : index
    %1 = vector.load %arg3[%c0_1, %c0_2] : memref<128x16xf32, #tpu.memory_space<vmem>>, vector<128x16xf32>
    %cst = arith.constant dense<0.000000e+00> : vector<25x16xf32>
    %2 = tpu.matmul %0, %1, %cst {dimension_numbers = #tpu.dot_dimension_numbers<[1], [0], [0], [1], [0, 0, 1, 1], [], []>, precision = #tpu.contract_precision<fp32>} : vector<25x128xf32>, vector<128x16xf32>, vector<25x16xf32> -> vector<25x16xf32>
    %c0_3 = arith.constant 0 : index
    %c0_4 = arith.constant 0 : index
    %3 = vector.load %arg2[%c0_3, %c0_4] : memref<25x4xi32, #tpu.memory_space<vmem>>, vector<25x4xi32>
    %4 = arith.sitofp %3 : vector<25x4xi32> to vector<25x4xf32>
    %5 = arith.truncf %4 : vector<25x4xf32> to vector<25x4xbf16>
    %c0_5 = arith.constant 0 : index
    %c0_6 = arith.constant 0 : index
    %6 = vector.load %arg4[%c0_5, %c0_6] : memref<4x16xbf16, #tpu.memory_space<vmem>>, vector<4x16xbf16>
    %cst_7 = arith.constant dense<0.000000e+00> : vector<25x16xf32>
    %7 = tpu.matmul %5, %6, %cst_7 {dimension_numbers = #tpu.dot_dimension_numbers<[1], [0], [0], [1], [0, 0, 1, 1], [], []>} : vector<25x4xbf16>, vector<4x16xbf16>, vector<25x16xf32> -> vector<25x16xf32>
    %cst_8 = arith.constant 1.000000e+00 : f32
    %8 = vector.broadcast %cst_8 : f32 to vector<25x16xf32>
    %9 = arith.maximumf %7, %8 : vector<25x16xf32>
    %10 = arith.divf %2, %9 : vector<25x16xf32>
    %c0_9 = arith.constant 0 : index
    %c0_10 = arith.constant 0 : index
    %11 = vector.load %arg5[%c0_9, %c0_10] : memref<25x16xf32, #tpu.memory_space<vmem>>, vector<25x16xf32>
    tpu.vector_store %arg5[%c0_9, %c0_10], %10 {strides = array<i32>} : memref<25x16xf32, #tpu.memory_space<vmem>>, vector<25x16xf32>,
    return
  }
  func.func @transform_0(%arg0: i32) -> (i32, i32) {
    %c0_i32 = arith.constant 0 : i32
    %c0_i32_0 = arith.constant 0 : i32
    return %arg0, %c0_i32 : i32, i32
  }
  func.func @transform_1(%arg0: i32) -> (i32, i32) {
    %c0_i32 = arith.constant 0 : i32
    %c0_i32_0 = arith.constant 0 : i32
    return %arg0, %c0_i32 : i32, i32
  }
  func.func @transform_2(%arg0: i32) -> (i32, i32) {
    %c0_i32 = arith.constant 0 : i32
    %c0_i32_0 = arith.constant 0 : i32
    %c0_i32_1 = arith.constant 0 : i32
    return %c0_i32, %c0_i32_0 : i32, i32
  }
  func.func @transform_3(%arg0: i32) -> (i32, i32) {
    %c0_i32 = arith.constant 0 : i32
    %c0_i32_0 = arith.constant 0 : i32
    %c0_i32_1 = arith.constant 0 : i32
    return %c0_i32, %c0_i32_0 : i32, i32
  }
  func.func @transform_4(%arg0: i32) -> (i32, i32) {
    %c0_i32 = arith.constant 0 : i32
    %c0_i32_0 = arith.constant 0 : i32
    return %arg0, %c0_i32 : i32, i32
  }
}

</mosaic_0001>

<llo_original>
// kernel: tpu_custom_call.1
$region0: #{tpu_custom_call.1}
  #allocation0 [shape = 'u32[]', space=smem, size = 0x4, offset = 0x4, fixed_abs, tag = 'smem constant byte address 0x4 - core index']
  #allocation1 [shape = 'u32[144,128]{1,0:T(1,128)}', space=vmem, size = 0x12000, scoped, tag = 'internal scratch']
  %s0 = inlined_call_operand.vmem [shape: f32[25,128], index: 0, kind: input, shape index: {}]
  %s1 = inlined_call_operand.vmem [shape: s32[25,4], index: 1, kind: input, shape index: {}]
  %s2 = inlined_call_operand.vmem [shape: f32[128,16], index: 2, kind: input, shape index: {}]
  %s3 = inlined_call_operand.vmem [shape: bf16[4,16], index: 3, kind: input, shape index: {}]
  %s4 = inlined_call_operand.vmem [shape: f32[25,16], index: 4, kind: output, shape index: {}]
  %s5 = sld [smem:[#allocation0]]
  $region26: #{tpu_custom_call.1} parent=0
    _
  %s7 = ssub.s32 1, %s5
  %s8 = scalar_select 0, %s7, %s5
  // Predicated region
  $region2: #{tpu_custom_call.1} parent=0 // pred_check
    _
  $region3: #{tpu_custom_call.1} parent=0 // pred_check_branch
    %10 = sbr.rel (0) target = $region5
  $region4: #{tpu_custom_call.1} parent=0 // pred_region
    _
  $region5: #{tpu_custom_call.1} parent=0 // pred_fallthru
    _
  // Predicated region
  $region6: #{tpu_custom_call.1} parent=0 // pred_check
    _
  $region7: #{tpu_custom_call.1} parent=0 // pred_check_branch
    %12 = sbr.rel (0) target = $region9
  $region8: #{tpu_custom_call.1} parent=0 // pred_region
    _
  $region9: #{tpu_custom_call.1} parent=0 // pred_fallthru
    _
  // Predicated region
  $region10: #{tpu_custom_call.1} parent=0 // pred_check
    _
  $region11: #{tpu_custom_call.1} parent=0 // pred_check_branch
    %14 = sbr.rel (0) target = $region13
  $region12: #{tpu_custom_call.1} parent=0 // pred_region
    _
  $region13: #{tpu_custom_call.1} parent=0 // pred_fallthru
    _
  // Predicated region
  $region14: #{tpu_custom_call.1} parent=0 // pred_check
    _
  $region15: #{tpu_custom_call.1} parent=0 // pred_check_branch
    %16 = sbr.rel (0) target = $region17
  $region16: #{tpu_custom_call.1} parent=0 // pred_region
    _
  $region17: #{tpu_custom_call.1} parent=0 // pred_fallthru
    _
  %v18 = vld [vmem:[%s0] sm:$0xff]
  %v19 = vld [vmem:[%s0 + $0x8] sm:$0xff]
  %v20 = vld [vmem:[%s0 + $0x10] sm:$0xff]
  %v21 = vld [vmem:[%s0 + $0x18] sm:$0x1]
  %v22 = vld [vmem:[%s2] sm:$0xff]
  %v23 = vld [vmem:[%s2 + $0x8] sm:$0xff]
  %v24 = vld [vmem:[%s2 + $0x10] sm:$0xff]
  %v25 = vld [vmem:[%s2 + $0x18] sm:$0xff]
  %v26 = vld [vmem:[%s2 + $0x20] sm:$0xff]
  %v27 = vld [vmem:[%s2 + $0x28] sm:$0xff]
  %v28 = vld [vmem:[%s2 + $0x30] sm:$0xff]
  %v29 = vld [vmem:[%s2 + $0x38] sm:$0xff]
  %v30 = vld [vmem:[%s2 + $0x40] sm:$0xff]
  %v31 = vld [vmem:[%s2 + $0x48] sm:$0xff]
  %v32 = vld [vmem:[%s2 + $0x50] sm:$0xff]
  %v33 = vld [vmem:[%s2 + $0x58] sm:$0xff]
  %v34 = vld [vmem:[%s2 + $0x60] sm:$0xff]
  %v35 = vld [vmem:[%s2 + $0x68] sm:$0xff]
  %v36 = vld [vmem:[%s2 + $0x70] sm:$0xff]
  %v37 = vld [vmem:[%s2 + $0x78] sm:$0xff]
  %38 = vmatprep.subr.mxu0 0.0
  %v39 = vand.u32 %v22, 4294901760
  %40 = vmatpush1.msra.mxu0 %v39
  %41 = vmatprep.subr.mxu0 0.0
  %v42 = vand.u32 %v23, 4294901760
  %43 = vmatpush1.msra.mxu0 %v42
  %44 = vmatprep.subr.mxu0 0.0
  %v45 = vand.u32 %v24, 4294901760
  %46 = vmatpush1.msra.mxu0 %v45
  %47 = vmatprep.subr.mxu0 0.0
  %v48 = vand.u32 %v25, 4294901760
  %49 = vmatpush1.msra.mxu0 %v48
  %50 = vmatprep.subr.mxu0 0.0
  %v51 = vand.u32 %v26, 4294901760
  %52 = vmatpush1.msra.mxu0 %v51
  %53 = vmatprep.subr.mxu0 0.0
  %v54 = vand.u32 %v27, 4294901760
  %55 = vmatpush1.msra.mxu0 %v54
  %56 = vmatprep.subr.mxu0 0.0
  %v57 = vand.u32 %v28, 4294901760
  %58 = vmatpush1.msra.mxu0 %v57
  %59 = vmatprep.subr.mxu0 0.0
  %v60 = vand.u32 %v29, 4294901760
  %61 = vmatpush1.msra.mxu0 %v60
  %62 = vmatprep.subr.mxu0 0.0
  %v63 = vand.u32 %v30, 4294901760
  %64 = vmatpush1.msra.mxu0 %v63
  %65 = vmatprep.subr.mxu0 0.0
  %v66 = vand.u32 %v31, 4294901760
  %67 = vmatpush1.msra.mxu0 %v66
  %68 = vmatprep.subr.mxu0 0.0
  %v69 = vand.u32 %v32, 4294901760
  %70 = vmatpush1.msra.mxu0 %v69
  %71 = vmatprep.subr.mxu0 0.0
  %v72 = vand.u32 %v33, 4294901760
  %73 = vmatpush1.msra.mxu0 %v72
  %74 = vmatprep.subr.mxu0 0.0
  %v75 = vand.u32 %v34, 4294901760
  %76 = vmatpush1.msra.mxu0 %v75
  %77 = vmatprep.subr.mxu0 0.0
  %v78 = vand.u32 %v35, 4294901760
  %79 = vmatpush1.msra.mxu0 %v78
  %80 = vmatprep.subr.mxu0 0.0
  %v81 = vand.u32 %v36, 4294901760
  %82 = vmatpush1.msra.mxu0 %v81
  %83 = vmatprep.subr.mxu0 0.0
  %v84 = vand.u32 %v37, 4294901760
  %85 = vmatpush1.msra.mxu0 %v84
  %86 = vmatprep.subr.mxu0 0.0
  %87 = vmatpush1.msra.mxu0 0.0
  %88 = vmatprep.subr.mxu0 0.0
  %89 = vmatpush1.msra.mxu0 0.0
  %90 = vmatprep.subr.mxu0 0.0
  %91 = vmatpush1.msra.mxu0 0.0
  %92 = vmatprep.subr.mxu0 0.0
  %93 = vmatpush1.msra.mxu0 0.0
  %94 = vmatprep.subr.mxu0 0.0
  %95 = vmatpush1.msra.mxu0 0.0
  %96 = vmatprep.subr.mxu0 0.0
  %97 = vmatpush1.msra.mxu0 0.0
  %98 = vmatprep.subr.mxu0 0.0
  %99 = vmatpush1.msra.mxu0 0.0
  %100 = vmatprep.subr.mxu0 0.0
  %101 = vmatpush1.msra.mxu0 0.0
  %102 = vmatprep.subr.mxu0 0.0
  %103 = vmatpush1.msra.mxu0 0.0
  %104 = vmatprep.subr.mxu0 0.0
  %105 = vmatpush1.msra.mxu0 0.0
  %106 = vmatprep.subr.mxu0 0.0
  %107 = vmatpush1.msra.mxu0 0.0
  %108 = vmatprep.subr.mxu0 0.0
  %109 = vmatpush1.msra.mxu0 0.0
  %110 = vmatprep.subr.mxu0 0.0
  %111 = vmatpush1.msra.mxu0 0.0
  %112 = vmatprep.subr.mxu0 0.0
  %113 = vmatpush1.msra.mxu0 0.0
  %114 = vmatprep.subr.mxu0 0.0
  %115 = vmatpush1.msra.mxu0 0.0
  %116 = vmatprep.subr.mxu0 0.0
  %117 = vmatpush1.msra.mxu0 0.0
  %118 = vmatprep.mubr.f32.mxu0 0.0
  %v119 = vand.u32 %v18, 4294901760
  %v120 = vsub.f32 %v18, %v119
  %v121 = vand.u32 %v120, 4294901760
  %v122 = vsub.f32 %v120, %v121
  %v123 = vand.u32 %v122, 4294901760
  %124 = vmatmul.mubr.f32.gmra.mrb[0].mxu0 %v123
  %v125 = vpop.f32.mrb[0].mxu0
  %v126 = vadd.f32 0.0, %v125
  %v127 = vpop.f32.mrb[0].mxu0
  %128 = vmatprep.mubr.f32.mxu0 0.0
  %v129 = vand.u32 %v19, 4294901760
  %v130 = vsub.f32 %v19, %v129
  %v131 = vand.u32 %v130, 4294901760
  %v132 = vsub.f32 %v130, %v131
  %v133 = vand.u32 %v132, 4294901760
  %134 = vmatmul.mubr.f32.gmra.mrb[0].mxu0 %v133
  %v135 = vpop.f32.mrb[0].mxu0
  %v136 = vadd.f32 0.0, %v135
  %v137 = vpop.f32.mrb[0].mxu0
  %138 = vmatprep.mubr.f32.mxu0 0.0
  %v139 = vand.u32 %v20, 4294901760
  %v140 = vsub.f32 %v20, %v139
  %v141 = vand.u32 %v140, 4294901760
  %v142 = vsub.f32 %v140, %v141
  %v143 = vand.u32 %v142, 4294901760
  %144 = vmatmul.mubr.f32.gmra.mrb[0].mxu0 %v143
  %v145 = vpop.f32.mrb[0].mxu0
  %v146 = vadd.f32 0.0, %v145
  %v147 = vpop.f32.mrb[0].mxu0
  %148 = vmatprep.mubr.f32.mxu0 0.0
  %v149 = vand.u32 %v21, 4294901760
  %v150 = vsub.f32 %v21, %v149
  %v151 = vand.u32 %v150, 4294901760
  %v152 = vsub.f32 %v150, %v151
  %v153 = vand.u32 %v152, 4294901760
  %154 = vmatmul.mubr.f32.gmra.mrb[0].mxu0 %v153
  %v155 = vpop.f32.mrb[0].mxu0
  %v156 = vadd.f32 0.0, %v155
  %v157 = vpop.f32.mrb[0].mxu0
  %158 = vdwg.mxu0
  %159 = vmatprep.subr.mxu0 0.0
  %v160 = vand.u32 %v22, 4294901760
  %v161 = vsub.f32 %v22, %v160
  %v162 = vand.u32 %v161, 4294901760
  %v163 = vsub.f32 %v161, %v162
  %v164 = vand.u32 %v163, 4294901760
  %165 = vmatpush1.msra.mxu0 %v164
  %166 = vmatprep.subr.mxu0 0.0
  %v167 = vand.u32 %v23, 4294901760
  %v168 = vsub.f32 %v23, %v167
  %v169 = vand.u32 %v168, 4294901760
  %v170 = vsub.f32 %v168, %v169
  %v171 = vand.u32 %v170, 4294901760
  %172 = vmatpush1.msra.mxu0 %v171
  %173 = vmatprep.subr.mxu0 0.0
  %v174 = vand.u32 %v24, 4294901760
  %v175 = vsub.f32 %v24, %v174
  %v176 = vand.u32 %v175, 4294901760
  %v177 = vsub.f32 %v175, %v176
  %v178 = vand.u32 %v177, 4294901760
  %179 = vmatpush1.msra.mxu0 %v178
  %180 = vmatprep.subr.mxu0 0.0
  %v181 = vand.u32 %v25, 4294901760
  %v182 = vsub.f32 %v25, %v181
  %v183 = vand.u32 %v182, 4294901760
  %v184 = vsub.f32 %v182, %v183
  %v185 = vand.u32 %v184, 4294901760
  %186 = vmatpush1.msra.mxu0 %v185
  %187 = vmatprep.subr.mxu0 0.0
  %v188 = vand.u32 %v26, 4294901760
  %v189 = vsub.f32 %v26, %v188
  %v190 = vand.u32 %v189, 4294901760
  %v191 = vsub.f32 %v189, %v190
  %v192 = vand.u32 %v191, 4294901760
  %193 = vmatpush1.msra.mxu0 %v192
  %194 = vmatprep.subr.mxu0 0.0
  %v195 = vand.u32 %v27, 4294901760
  %v196 = vsub.f32 %v27, %v195
  %v197 = vand.u32 %v196, 4294901760
  %v198 = vsub.f32 %v196, %v197
  %v199 = vand.u32 %v198, 4294901760
  %200 = vmatpush1.msra.mxu0 %v199
  %201 = vmatprep.subr.mxu0 0.0
  %v202 = vand.u32 %v28, 4294901760
  %v203 = vsub.f32 %v28, %v202
  %v204 = vand.u32 %v203, 4294901760
  %v205 = vsub.f32 %v203, %v204
  %v206 = vand.u32 %v205, 4294901760
  %207 = vmatpush1.msra.mxu0 %v206
  %208 = vmatprep.subr.mxu0 0.0
  %v209 = vand.u32 %v29, 4294901760
  %v210 = vsub.f32 %v29, %v209
  %v211 = vand.u32 %v210, 4294901760
  %v212 = vsub.f32 %v210, %v211
  %v213 = vand.u32 %v212, 4294901760
  %214 = vmatpush1.msra.mxu0 %v213
  %215 = vmatprep.subr.mxu0 0.0
  %v216 = vand.u32 %v30, 4294901760
  %v217 = vsub.f32 %v30, %v216
  %v218 = vand.u32 %v217, 4294901760
  %v219 = vsub.f32 %v217, %v218
  %v220 = vand.u32 %v219, 4294901760
  %221 = vmatpush1.msra.mxu0 %v220
  %222 = vmatprep.subr.mxu0 0.0
  %v223 = vand.u32 %v31, 4294901760
  %v224 = vsub.f32 %v31, %v223
  %v225 = vand.u32 %v224, 4294901760
  %v226 = vsub.f32 %v224, %v225
  %v227 = vand.u32 %v226, 4294901760
  %228 = vmatpush1.msra.mxu0 %v227
  %229 = vmatprep.subr.mxu0 0.0
  %v230 = vand.u32 %v32, 4294901760
  %v231 = vsub.f32 %v32, %v230
  %v232 = vand.u32 %v231, 4294901760
  %v233 = vsub.f32 %v231, %v232
  %v234 = vand.u32 %v233, 4294901760
  %235 = vmatpush1.msra.mxu0 %v234
  %236 = vmatprep.subr.mxu0 0.0
  %v237 = vand.u32 %v33, 4294901760
  %v238 = vsub.f32 %v33, %v237
  %v239 = vand.u32 %v238, 4294901760
  %v240 = vsub.f32 %v238, %v239
  %v241 = vand.u32 %v240, 4294901760
  %242 = vmatpush1.msra.mxu0 %v241
  %243 = vmatprep.subr.mxu0 0.0
  %v244 = vand.u32 %v34, 4294901760
  %v245 = vsub.f32 %v34, %v244
  %v246 = vand.u32 %v245, 4294901760
  %v247 = vsub.f32 %v245, %v246
  %v248 = vand.u32 %v247, 4294901760
  %249 = vmatpush1.msra.mxu0 %v248
  %250 = vmatprep.subr.mxu0 0.0
  %v251 = vand.u32 %v35, 4294901760
  %v252 = vsub.f32 %v35, %v251
  %v253 = vand.u32 %v252, 4294901760
  %v254 = vsub.f32 %v252, %v253
  %v255 = vand.u32 %v254, 4294901760
  %256 = vmatpush1.msra.mxu0 %v255
  %257 = vmatprep.subr.mxu0 0.0
  %v258 = vand.u32 %v36, 4294901760
  %v259 = vsub.f32 %v36, %v258
  %v260 = vand.u32 %v259, 4294901760
  %v261 = vsub.f32 %v259, %v260
  %v262 = vand.u32 %v261, 4294901760
  %263 = vmatpush1.msra.mxu0 %v262
  %264 = vmatprep.subr.mxu0 0.0
  %v265 = vand.u32 %v37, 4294901760
  %v266 = vsub.f32 %v37, %v265
  %v267 = vand.u32 %v266, 4294901760
  %v268 = vsub.f32 %v266, %v267
  %v269 = vand.u32 %v268, 4294901760
  %270 = vmatpush1.msra.mxu0 %v269
  %271 = vmatprep.subr.mxu0 0.0
  %272 = vmatpush1.msra.mxu0 0.0
  %273 = vmatprep.subr.mxu0 0.0
  %274 = vmatpush1.msra.mxu0 0.0
  %275 = vmatprep.subr.mxu0 0.0
  %276 = vmatpush1.msra.mxu0 0.0
  %277 = vmatprep.subr.mxu0 0.0
  %278 = vmatpush1.msra.mxu0 0.0
  %279 = vmatprep.subr.mxu0 0.0
  %280 = vmatpush1.msra.mxu0 0.0
  %281 = vmatprep.subr.mxu0 0.0
  %282 = vmatpush1.msra.mxu0 0.0
  %283 = vmatprep.subr.mxu0 0.0
  %284 = vmatpush1.msra.mxu0 0.0
  %285 = vmatprep.subr.mxu0 0.0
  %286 = vmatpush1.msra.mxu0 0.0
  %287 = vmatprep.subr.mxu0 0.0
  %288 = vmatpush1.msra.mxu0 0.0
  %289 = vmatprep.subr.mxu0 0.0
  %290 = vmatpush1.msra.mxu0 0.0
  %291 = vmatprep.subr.mxu0 0.0
  %292 = vmatpush1.msra.mxu0 0.0
  %293 = vmatprep.subr.mxu0 0.0
  %294 = vmatpush1.msra.mxu0 0.0
  %295 = vmatprep.subr.mxu0 0.0
  %296 = vmatpush1.msra.mxu0 0.0
  %297 = vmatprep.subr.mxu0 0.0
  %298 = vmatpush1.msra.mxu0 0.0
  %299 = vmatprep.subr.mxu0 0.0
  %300 = vmatpush1.msra.mxu0 0.0
  %301 = vmatprep.subr.mxu0 0.0
  %302 = vmatpush1.msra.mxu0 0.0
  %303 = vmatprep.mubr.f32.mxu0 0.0
  %v304 = vand.u32 %v18, 4294901760
  %305 = vmatmul.mubr.f32.gmra.mrb[0].mxu0 %v304
  %v306 = vpop.f32.mrb[0].mxu0
  %v307 = vadd.f32 %v126, %v306
  %v308 = vpop.f32.mrb[0].mxu0
  %309 = vmatprep.mubr.f32.mxu0 0.0
  %v310 = vand.u32 %v19, 4294901760
  %311 = vmatmul.mubr.f32.gmra.mrb[0].mxu0 %v310
  %v312 = vpop.f32.mrb[0].mxu0
  %v313 = vadd.f32 %v136, %v312
  %v314 = vpop.f32.mrb[0].mxu0
  %315 = vmatprep.mubr.f32.mxu0 0.0
  %v316 = vand.u32 %v20, 4294901760
  %317 = vmatmul.mubr.f32.gmra.mrb[0].mxu0 %v316
  %v318 = vpop.f32.mrb[0].mxu0
  %v319 = vadd.f32 %v146, %v318
  %v320 = vpop.f32.mrb[0].mxu0
  %321 = vmatprep.mubr.f32.mxu0 0.0
  %v322 = vand.u32 %v21, 4294901760
  %323 = vmatmul.mubr.f32.gmra.mrb[0].mxu0 %v322
  %v324 = vpop.f32.mrb[0].mxu0
  %v325 = vadd.f32 %v156, %v324
  %v326 = vpop.f32.mrb[0].mxu0
  %327 = vdwg.mxu0
  %328 = vmatprep.subr.mxu0 0.0
  %v329 = vand.u32 %v22, 4294901760
  %v330 = vsub.f32 %v22, %v329
  %331 = vmatpush1.msra.mxu0 %v330
  %332 = vmatprep.subr.mxu0 0.0
  %v333 = vand.u32 %v23, 4294901760
  %v334 = vsub.f32 %v23, %v333
  %335 = vmatpush1.msra.mxu0 %v334
  %336 = vmatprep.subr.mxu0 0.0
  %v337 = vand.u32 %v24, 4294901760
  %v338 = vsub.f32 %v24, %v337
  %339 = vmatpush1.msra.mxu0 %v338
  %340 = vmatprep.subr.mxu0 0.0
  %v341 = vand.u32 %v25, 4294901760
  %v342 = vsub.f32 %v25, %v341
  %343 = vmatpush1.msra.mxu0 %v342
  %344 = vmatprep.subr.mxu0 0.0
  %v345 = vand.u32 %v26, 4294901760
  %v346 = vsub.f32 %v26, %v345
  %347 = vmatpush1.msra.mxu0 %v346
  %348 = vmatprep.subr.mxu0 0.0
  %v349 = vand.u32 %v27, 4294901760
  %v350 = vsub.f32 %v27, %v349
  %351 = vmatpush1.msra.mxu0 %v350
  %352 = vmatprep.subr.mxu0 0.0
  %v353 = vand.u32 %v28, 4294901760
  %v354 = vsub.f32 %v28, %v353
  %355 = vmatpush1.msra.mxu0 %v354
  %356 = vmatprep.subr.mxu0 0.0
  %v357 = vand.u32 %v29, 4294901760
  %v358 = vsub.f32 %v29, %v357
  %359 = vmatpush1.msra.mxu0 %v358
  %360 = vmatprep.subr.mxu0 0.0
  %v361 = vand.u32 %v30, 4294901760
  %v362 = vsub.f32 %v30, %v361
  %363 = vmatpush1.msra.mxu0 %v362
  %364 = vmatprep.subr.mxu0 0.0
  %v365 = vand.u32 %v31, 4294901760
  %v366 = vsub.f32 %v31, %v365
  %367 = vmatpush1.msra.mxu0 %v366
  %368 = vmatprep.subr.mxu0 0.0
  %v369 = vand.u32 %v32, 4294901760
  %v370 = vsub.f32 %v32, %v369
  %371 = vmatpush1.msra.mxu0 %v370
  %372 = vmatprep.subr.mxu0 0.0
  %v373 = vand.u32 %v33, 4294901760
  %v374 = vsub.f32 %v33, %v373
  %375 = vmatpush1.msra.mxu0 %v374
  %376 = vmatprep.subr.mxu0 0.0
  %v377 = vand.u32 %v34, 4294901760
  %v378 = vsub.f32 %v34, %v377
  %379 = vmatpush1.msra.mxu0 %v378
  %380 = vmatprep.subr.mxu0 0.0
  %v381 = vand.u32 %v35, 4294901760
  %v382 = vsub.f32 %v35, %v381
  %383 = vmatpush1.msra.mxu0 %v382
  %384 = vmatprep.subr.mxu0 0.0
  %v385 = vand.u32 %v36, 4294901760
  %v386 = vsub.f32 %v36, %v385
  %387 = vmatpush1.msra.mxu0 %v386
  %388 = vmatprep.subr.mxu0 0.0
  %v389 = vand.u32 %v37, 4294901760
  %v390 = vsub.f32 %v37, %v389
  %391 = vmatpush1.msra.mxu0 %v390
  %392 = vmatprep.subr.mxu0 0.0
  %393 = vmatpush1.msra.mxu0 0.0
  %394 = vmatprep.subr.mxu0 0.0
  %395 = vmatpush1.msra.mxu0 0.0
  %396 = vmatprep.subr.mxu0 0.0
  %397 = vmatpush1.msra.mxu0 0.0
  %398 = vmatprep.subr.mxu0 0.0
  %399 = vmatpush1.msra.mxu0 0.0
  %400 = vmatprep.subr.mxu0 0.0
  %401 = vmatpush1.msra.mxu0 0.0
  %402 = vmatprep.subr.mxu0 0.0
  %403 = vmatpush1.msra.mxu0 0.0
  %404 = vmatprep.subr.mxu0 0.0
  %405 = vmatpush1.msra.mxu0 0.0
  %406 = vmatprep.subr.mxu0 0.0
  %407 = vmatpush1.msra.mxu0 0.0
  %408 = vmatprep.subr.mxu0 0.0
  %409 = vmatpush1.msra.mxu0 0.0
  %410 = vmatprep.subr.mxu0 0.0
  %411 = vmatpush1.msra.mxu0 0.0
  %412 = vmatprep.subr.mxu0 0.0
  %413 = vmatpush1.msra.mxu0 0.0
  %414 = vmatprep.subr.mxu0 0.0
  %415 = vmatpush1.msra.mxu0 0.0
  %416 = vmatprep.subr.mxu0 0.0
  %417 = vmatpush1.msra.mxu0 0.0
  %418 = vmatprep.subr.mxu0 0.0
  %419 = vmatpush1.msra.mxu0 0.0
  %420 = vmatprep.subr.mxu0 0.0
  %421 = vmatpush1.msra.mxu0 0.0
  %422 = vmatprep.subr.mxu0 0.0
  %423 = vmatpush1.msra.mxu0 0.0
  %424 = vmatprep.mubr.f32.mxu0 0.0
  %v425 = vand.u32 %v18, 4294901760
  %v426 = vsub.f32 %v18, %v425
  %427 = vmatmul.mubr.f32.gmra.mrb[0].mxu0 %v426
  %v428 = vpop.f32.mrb[0].mxu0
  %v429 = vadd.f32 %v307, %v428
  %v430 = vpop.f32.mrb[0].mxu0
  %431 = vmatprep.mubr.f32.mxu0 0.0
  %v432 = vand.u32 %v19, 4294901760
  %v433 = vsub.f32 %v19, %v432
  %434 = vmatmul.mubr.f32.gmra.mrb[0].mxu0 %v433
  %v435 = vpop.f32.mrb[0].mxu0
  %v436 = vadd.f32 %v313, %v435
  %v437 = vpop.f32.mrb[0].mxu0
  %438 = vmatprep.mubr.f32.mxu0 0.0
  %v439 = vand.u32 %v20, 4294901760
  %v440 = vsub.f32 %v20, %v439
  %441 = vmatmul.mubr.f32.gmra.mrb[0].mxu0 %v440
  %v442 = vpop.f32.mrb[0].mxu0
  %v443 = vadd.f32 %v319, %v442
  %v444 = vpop.f32.mrb[0].mxu0
  %445 = vmatprep.mubr.f32.mxu0 0.0
  %v446 = vand.u32 %v21, 4294901760
  %v447 = vsub.f32 %v21, %v446
  %448 = vmatmul.mubr.f32.gmra.mrb[0].mxu0 %v447
  %v449 = vpop.f32.mrb[0].mxu0
  %v450 = vadd.f32 %v325, %v449
  %v451 = vpop.f32.mrb[0].mxu0
  %452 = vdwg.mxu0
  %453 = vmatprep.subr.mxu0 0.0
  %v454 = vand.u32 %v22, 4294901760
  %455 = vmatpush1.msra.mxu0 %v454
  %456 = vmatprep.subr.mxu0 0.0
  %v457 = vand.u32 %v23, 4294901760
  %458 = vmatpush1.msra.mxu0 %v457
  %459 = vmatprep.subr.mxu0 0.0
  %v460 = vand.u32 %v24, 4294901760
  %461 = vmatpush1.msra.mxu0 %v460
  %462 = vmatprep.subr.mxu0 0.0
  %v463 = vand.u32 %v25, 4294901760
  %464 = vmatpush1.msra.mxu0 %v463
  %465 = vmatprep.subr.mxu0 0.0
  %v466 = vand.u32 %v26, 4294901760
  %467 = vmatpush1.msra.mxu0 %v466
  %468 = vmatprep.subr.mxu0 0.0
  %v469 = vand.u32 %v27, 4294901760
  %470 = vmatpush1.msra.mxu0 %v469
  %471 = vmatprep.subr.mxu0 0.0
  %v472 = vand.u32 %v28, 4294901760
  %473 = vmatpush1.msra.mxu0 %v472
  %474 = vmatprep.subr.mxu0 0.0
  %v475 = vand.u32 %v29, 4294901760
  %476 = vmatpush1.msra.mxu0 %v475
  %477 = vmatprep.subr.mxu0 0.0
  %v478 = vand.u32 %v30, 4294901760
  %479 = vmatpush1.msra.mxu0 %v478
  %480 = vmatprep.subr.mxu0 0.0
  %v481 = vand.u32 %v31, 4294901760
  %482 = vmatpush1.msra.mxu0 %v481
  %483 = vmatprep.subr.mxu0 0.0
  %v484 = vand.u32 %v32, 4294901760
  %485 = vmatpush1.msra.mxu0 %v484
  %486 = vmatprep.subr.mxu0 0.0
  %v487 = vand.u32 %v33, 4294901760
  %488 = vmatpush1.msra.mxu0 %v487
  %489 = vmatprep.subr.mxu0 0.0
  %v490 = vand.u32 %v34, 4294901760
  %491 = vmatpush1.msra.mxu0 %v490
  %492 = vmatprep.subr.mxu0 0.0
  %v493 = vand.u32 %v35, 4294901760
  %494 = vmatpush1.msra.mxu0 %v493
  %495 = vmatprep.subr.mxu0 0.0
  %v496 = vand.u32 %v36, 4294901760
  %497 = vmatpush1.msra.mxu0 %v496
  %498 = vmatprep.subr.mxu0 0.0
  %v499 = vand.u32 %v37, 4294901760
  %500 = vmatpush1.msra.mxu0 %v499
  %501 = vmatprep.subr.mxu0 0.0
  %502 = vmatpush1.msra.mxu0 0.0
  %503 = vmatprep.subr.mxu0 0.0
  %504 = vmatpush1.msra.mxu0 0.0
  %505 = vmatprep.subr.mxu0 0.0
  %506 = vmatpush1.msra.mxu0 0.0
  %507 = vmatprep.subr.mxu0 0.0
  %508 = vmatpush1.msra.mxu0 0.0
  %509 = vmatprep.subr.mxu0 0.0
  %510 = vmatpush1.msra.mxu0 0.0
  %511 = vmatprep.subr.mxu0 0.0
  %512 = vmatpush1.msra.mxu0 0.0
  %513 = vmatprep.subr.mxu0 0.0
  %514 = vmatpush1.msra.mxu0 0.0
  %515 = vmatprep.subr.mxu0 0.0
  %516 = vmatpush1.msra.mxu0 0.0
  %517 = vmatprep.subr.mxu0 0.0
  %518 = vmatpush1.msra.mxu0 0.0
  %519 = vmatprep.subr.mxu0 0.0
  %520 = vmatpush1.msra.mxu0 0.0
  %521 = vmatprep.subr.mxu0 0.0
  %522 = vmatpush1.msra.mxu0 0.0
  %523 = vmatprep.subr.mxu0 0.0
  %524 = vmatpush1.msra.mxu0 0.0
  %525 = vmatprep.subr.mxu0 0.0
  %526 = vmatpush1.msra.mxu0 0.0
  %527 = vmatprep.subr.mxu0 0.0
  %528 = vmatpush1.msra.mxu0 0.0
  %529 = vmatprep.subr.mxu0 0.0
  %530 = vmatpush1.msra.mxu0 0.0
  %531 = vmatprep.subr.mxu0 0.0
  %532 = vmatpush1.msra.mxu0 0.0
  %533 = vmatprep.mubr.f32.mxu0 0.0
  %v534 = vand.u32 %v18, 4294901760
  %v535 = vsub.f32 %v18, %v534
  %v536 = vand.u32 %v535, 4294901760
  %537 = vmatmul.mubr.f32.gmra.mrb[0].mxu0 %v536
  %v538 = vpop.f32.mrb[0].mxu0
  %v539 = vadd.f32 %v429, %v538
  %v540 = vpop.f32.mrb[0].mxu0
  %541 = vmatprep.mubr.f32.mxu0 0.0
  %v542 = vand.u32 %v19, 4294901760
  %v543 = vsub.f32 %v19, %v542
  %v544 = vand.u32 %v543, 4294901760
  %545 = vmatmul.mubr.f32.gmra.mrb[0].mxu0 %v544
  %v546 = vpop.f32.mrb[0].mxu0
  %v547 = vadd.f32 %v436, %v546
  %v548 = vpop.f32.mrb[0].mxu0
  %549 = vmatprep.mubr.f32.mxu0 0.0
  %v550 = vand.u32 %v20, 4294901760
  %v551 = vsub.f32 %v20, %v550
  %v552 = vand.u32 %v551, 4294901760
  %553 = vmatmul.mubr.f32.gmra.mrb[0].mxu0 %v552
  %v554 = vpop.f32.mrb[0].mxu0
  %v555 = vadd.f32 %v443, %v554
  %v556 = vpop.f32.mrb[0].mxu0
  %557 = vmatprep.mubr.f32.mxu0 0.0
  %v558 = vand.u32 %v21, 4294901760
  %v559 = vsub.f32 %v21, %v558
  %v560 = vand.u32 %v559, 4294901760
  %561 = vmatmul.mubr.f32.gmra.mrb[0].mxu0 %v560
  %v562 = vpop.f32.mrb[0].mxu0
  %v563 = vadd.f32 %v450, %v562
  %v564 = vpop.f32.mrb[0].mxu0
  %565 = vdwg.mxu0
  %566 = vmatprep.subr.mxu0 0.0
  %v567 = vand.u32 %v22, 4294901760
  %v568 = vsub.f32 %v22, %v567
  %v569 = vand.u32 %v568, 4294901760
  %570 = vmatpush1.msra.mxu0 %v569
  %571 = vmatprep.subr.mxu0 0.0
  %v572 = vand.u32 %v23, 4294901760
  %v573 = vsub.f32 %v23, %v572
  %v574 = vand.u32 %v573, 4294901760
  %575 = vmatpush1.msra.mxu0 %v574
  %576 = vmatprep.subr.mxu0 0.0
  %v577 = vand.u32 %v24, 4294901760
  %v578 = vsub.f32 %v24, %v577
  %v579 = vand.u32 %v578, 4294901760
  %580 = vmatpush1.msra.mxu0 %v579
  %581 = vmatprep.subr.mxu0 0.0
  %v582 = vand.u32 %v25, 4294901760
  %v583 = vsub.f32 %v25, %v582
  %v584 = vand.u32 %v583, 4294901760
  %585 = vmatpush1.msra.mxu0 %v584
  %586 = vmatprep.subr.mxu0 0.0
  %v587 = vand.u32 %v26, 4294901760
  %v588 = vsub.f32 %v26, %v587
  %v589 = vand.u32 %v588, 4294901760
  %590 = vmatpush1.msra.mxu0 %v589
  %591 = vmatprep.subr.mxu0 0.0
  %v592 = vand.u32 %v27, 4294901760
  %v593 = vsub.f32 %v27, %v592
  %v594 = vand.u32 %v593, 4294901760
  %595 = vmatpush1.msra.mxu0 %v594
  %596 = vmatprep.subr.mxu0 0.0
  %v597 = vand.u32 %v28, 4294901760
  %v598 = vsub.f32 %v28, %v597
  %v599 = vand.u32 %v598, 4294901760
  %600 = vmatpush1.msra.mxu0 %v599
  %601 = vmatprep.subr.mxu0 0.0
  %v602 = vand.u32 %v29, 4294901760
  %v603 = vsub.f32 %v29, %v602
  %v604 = vand.u32 %v603, 4294901760
  %605 = vmatpush1.msra.mxu0 %v604
  %606 = vmatprep.subr.mxu0 0.0
  %v607 = vand.u32 %v30, 4294901760
  %v608 = vsub.f32 %v30, %v607
  %v609 = vand.u32 %v608, 4294901760
  %610 = vmatpush1.msra.mxu0 %v609
  %611 = vmatprep.subr.mxu0 0.0
  %v612 = vand.u32 %v31, 4294901760
  %v613 = vsub.f32 %v31, %v612
  %v614 = vand.u32 %v613, 4294901760
  %615 = vmatpush1.msra.mxu0 %v614
  %616 = vmatprep.subr.mxu0 0.0
  %v617 = vand.u32 %v32, 4294901760
  %v618 = vsub.f32 %v32, %v617
  %v619 = vand.u32 %v618, 4294901760
  %620 = vmatpush1.msra.mxu0 %v619
  %621 = vmatprep.subr.mxu0 0.0
  %v622 = vand.u32 %v33, 4294901760
  %v623 = vsub.f32 %v33, %v622
  %v624 = vand.u32 %v623, 4294901760
  %625 = vmatpush1.msra.mxu0 %v624
  %626 = vmatprep.subr.mxu0 0.0
  %v627 = vand.u32 %v34, 4294901760
  %v628 = vsub.f32 %v34, %v627
  %v629 = vand.u32 %v628, 4294901760
  %630 = vmatpush1.msra.mxu0 %v629
  %631 = vmatprep.subr.mxu0 0.0
  %v632 = vand.u32 %v35, 4294901760
  %v633 = vsub.f32 %v35, %v632
  %v634 = vand.u32 %v633, 4294901760
  %635 = vmatpush1.msra.mxu0 %v634
  %636 = vmatprep.subr.mxu0 0.0
  %v637 = vand.u32 %v36, 4294901760
  %v638 = vsub.f32 %v36, %v637
  %v639 = vand.u32 %v638, 4294901760
  %640 = vmatpush1.msra.mxu0 %v639
  %641 = vmatprep.subr.mxu0 0.0
  %v642 = vand.u32 %v37, 4294901760
  %v643 = vsub.f32 %v37, %v642
  %v644 = vand.u32 %v643, 4294901760
  %645 = vmatpush1.msra.mxu0 %v644
  %646 = vmatprep.subr.mxu0 0.0
  %647 = vmatpush1.msra.mxu0 0.0
  %648 = vmatprep.subr.mxu0 0.0
  %649 = vmatpush1.msra.mxu0 0.0
  %650 = vmatprep.subr.mxu0 0.0
  %651 = vmatpush1.msra.mxu0 0.0
  %652 = vmatprep.subr.mxu0 0.0
  %653 = vmatpush1.msra.mxu0 0.0
  %654 = vmatprep.subr.mxu0 0.0
  %655 = vmatpush1.msra.mxu0 0.0
  %656 = vmatprep.subr.mxu0 0.0
  %657 = vmatpush1.msra.mxu0 0.0
  %658 = vmatprep.subr.mxu0 0.0
  %659 = vmatpush1.msra.mxu0 0.0
  %660 = vmatprep.subr.mxu0 0.0
  %661 = vmatpush1.msra.mxu0 0.0
  %662 = vmatprep.subr.mxu0 0.0
  %663 = vmatpush1.msra.mxu0 0.0
  %664 = vmatprep.subr.mxu0 0.0
  %665 = vmatpush1.msra.mxu0 0.0
  %666 = vmatprep.subr.mxu0 0.0
  %667 = vmatpush1.msra.mxu0 0.0
  %668 = vmatprep.subr.mxu0 0.0
  %669 = vmatpush1.msra.mxu0 0.0
  %670 = vmatprep.subr.mxu0 0.0
  %671 = vmatpush1.msra.mxu0 0.0
  %672 = vmatprep.subr.mxu0 0.0
  %673 = vmatpush1.msra.mxu0 0.0
  %674 = vmatprep.subr.mxu0 0.0
  %675 = vmatpush1.msra.mxu0 0.0
  %676 = vmatprep.subr.mxu0 0.0
  %677 = vmatpush1.msra.mxu0 0.0
  %678 = vmatprep.mubr.f32.mxu0 0.0
  %v679 = vand.u32 %v18, 4294901760
  %680 = vmatmul.mubr.f32.gmra.mrb[0].mxu0 %v679
  %v681 = vpop.f32.mrb[0].mxu0
  %v682 = vadd.f32 %v539, %v681
  %v683 = vpop.f32.mrb[0].mxu0
  %684 = vmatprep.mubr.f32.mxu0 0.0
  %v685 = vand.u32 %v19, 4294901760
  %686 = vmatmul.mubr.f32.gmra.mrb[0].mxu0 %v685
  %v687 = vpop.f32.mrb[0].mxu0
  %v688 = vadd.f32 %v547, %v687
  %v689 = vpop.f32.mrb[0].mxu0
  %690 = vmatprep.mubr.f32.mxu0 0.0
  %v691 = vand.u32 %v20, 4294901760
  %692 = vmatmul.mubr.f32.gmra.mrb[0].mxu0 %v691
  %v693 = vpop.f32.mrb[0].mxu0
  %v694 = vadd.f32 %v555, %v693
  %v695 = vpop.f32.mrb[0].mxu0
  %696 = vmatprep.mubr.f32.mxu0 0.0
  %v697 = vand.u32 %v21, 4294901760
  %698 = vmatmul.mubr.f32.gmra.mrb[0].mxu0 %v697
  %v699 = vpop.f32.mrb[0].mxu0
  %v700 = vadd.f32 %v563, %v699
  %v701 = vpop.f32.mrb[0].mxu0
  %702 = vdwg.mxu0
  %703 = vmatprep.subr.mxu0 0.0
  %v704 = vand.u32 %v22, 4294901760
  %705 = vmatpush1.msra.mxu0 %v704
  %706 = vmatprep.subr.mxu0 0.0
  %v707 = vand.u32 %v23, 4294901760
  %708 = vmatpush1.msra.mxu0 %v707
  %709 = vmatprep.subr.mxu0 0.0
  %v710 = vand.u32 %v24, 4294901760
  %711 = vmatpush1.msra.mxu0 %v710
  %712 = vmatprep.subr.mxu0 0.0
  %v713 = vand.u32 %v25, 4294901760
  %714 = vmatpush1.msra.mxu0 %v713
  %715 = vmatprep.subr.mxu0 0.0
  %v716 = vand.u32 %v26, 4294901760
  %717 = vmatpush1.msra.mxu0 %v716
  %718 = vmatprep.subr.mxu0 0.0
  %v719 = vand.u32 %v27, 4294901760
  %720 = vmatpush1.msra.mxu0 %v719
  %721 = vmatprep.subr.mxu0 0.0
  %v722 = vand.u32 %v28, 4294901760
  %723 = vmatpush1.msra.mxu0 %v722
  %724 = vmatprep.subr.mxu0 0.0
  %v725 = vand.u32 %v29, 4294901760
  %726 = vmatpush1.msra.mxu0 %v725
  %727 = vmatprep.subr.mxu0 0.0
  %v728 = vand.u32 %v30, 4294901760
  %729 = vmatpush1.msra.mxu0 %v728
  %730 = vmatprep.subr.mxu0 0.0
  %v731 = vand.u32 %v31, 4294901760
  %732 = vmatpush1.msra.mxu0 %v731
  %733 = vmatprep.subr.mxu0 0.0
  %v734 = vand.u32 %v32, 4294901760
  %735 = vmatpush1.msra.mxu0 %v734
  %736 = vmatprep.subr.mxu0 0.0
  %v737 = vand.u32 %v33, 4294901760
  %738 = vmatpush1.msra.mxu0 %v737
  %739 = vmatprep.subr.mxu0 0.0
  %v740 = vand.u32 %v34, 4294901760
  %741 = vmatpush1.msra.mxu0 %v740
  %742 = vmatprep.subr.mxu0 0.0
  %v743 = vand.u32 %v35, 4294901760
  %744 = vmatpush1.msra.mxu0 %v743
  %745 = vmatprep.subr.mxu0 0.0
  %v746 = vand.u32 %v36, 4294901760
  %747 = vmatpush1.msra.mxu0 %v746
  %748 = vmatprep.subr.mxu0 0.0
  %v749 = vand.u32 %v37, 4294901760
  %750 = vmatpush1.msra.mxu0 %v749
  %751 = vmatprep.subr.mxu0 0.0
  %752 = vmatpush1.msra.mxu0 0.0
  %753 = vmatprep.subr.mxu0 0.0
  %754 = vmatpush1.msra.mxu0 0.0
  %755 = vmatprep.subr.mxu0 0.0
  %756 = vmatpush1.msra.mxu0 0.0
  %757 = vmatprep.subr.mxu0 0.0
  %758 = vmatpush1.msra.mxu0 0.0
  %759 = vmatprep.subr.mxu0 0.0
  %760 = vmatpush1.msra.mxu0 0.0
  %761 = vmatprep.subr.mxu0 0.0
  %762 = vmatpush1.msra.mxu0 0.0
  %763 = vmatprep.subr.mxu0 0.0
  %764 = vmatpush1.msra.mxu0 0.0
  %765 = vmatprep.subr.mxu0 0.0
  %766 = vmatpush1.msra.mxu0 0.0
  %767 = vmatprep.subr.mxu0 0.0
  %768 = vmatpush1.msra.mxu0 0.0
  %769 = vmatprep.subr.mxu0 0.0
  %770 = vmatpush1.msra.mxu0 0.0
  %771 = vmatprep.subr.mxu0 0.0
  %772 = vmatpush1.msra.mxu0 0.0
  %773 = vmatprep.subr.mxu0 0.0
  %774 = vmatpush1.msra.mxu0 0.0
  %775 = vmatprep.subr.mxu0 0.0
  %776 = vmatpush1.msra.mxu0 0.0
  %777 = vmatprep.subr.mxu0 0.0
  %778 = vmatpush1.msra.mxu0 0.0
  %779 = vmatprep.subr.mxu0 0.0
  %780 = vmatpush1.msra.mxu0 0.0
  %781 = vmatprep.subr.mxu0 0.0
  %782 = vmatpush1.msra.mxu0 0.0
  %783 = vmatprep.mubr.f32.mxu0 0.0
  %v784 = vand.u32 %v18, 4294901760
  %785 = vmatmul.mubr.f32.gmra.mrb[0].mxu0 %v784
  %v786 = vpop.f32.mrb[0].mxu0
  %v787 = vadd.f32 %v682, %v786
  %v788 = vpop.f32.mrb[0].mxu0
  %789 = vmatprep.mubr.f32.mxu0 0.0
  %v790 = vand.u32 %v19, 4294901760
  %791 = vmatmul.mubr.f32.gmra.mrb[0].mxu0 %v790
  %v792 = vpop.f32.mrb[0].mxu0
  %v793 = vadd.f32 %v688, %v792
  %v794 = vpop.f32.mrb[0].mxu0
  %795 = vmatprep.mubr.f32.mxu0 0.0
  %v796 = vand.u32 %v20, 4294901760
  %797 = vmatmul.mubr.f32.gmra.mrb[0].mxu0 %v796
  %v798 = vpop.f32.mrb[0].mxu0
  %v799 = vadd.f32 %v694, %v798
  %v800 = vpop.f32.mrb[0].mxu0
  %801 = vmatprep.mubr.f32.mxu0 0.0
  %v802 = vand.u32 %v21, 4294901760
  %803 = vmatmul.mubr.f32.gmra.mrb[0].mxu0 %v802
  %v804 = vpop.f32.mrb[0].mxu0
  %v805 = vadd.f32 %v700, %v804
  %v806 = vpop.f32.mrb[0].mxu0
  %807 = vdwg.mxu0
  %v808 = vld [vmem:[%s1] sm:$0xff]
  %v809 = vld [vmem:[%s1 + $0x8] sm:$0xff]
  %v810 = vld [vmem:[%s1 + $0x10] sm:$0xff]
  %v811 = vld [vmem:[%s1 + $0x18] sm:$0x1]
  %v812 = vcvt.s32.f32 %v808
  %v813 = vcvt.s32.f32 %v809
  %v814 = vcvt.s32.f32 %v810
  %v815 = vcvt.s32.f32 %v811
  %v816 = vpack.c.bf16 %v813, %v812
  %v817 = vpack.c.bf16 %v815, %v814
  %v818 = vld [vmem:[%s3] sm:$0x3]
  %vm819 = vcmask 31744
  %v821 = vsel %vm819, %v816, 0
  %v824 = vsel %vm819, %v817, 0
  %vm826 = vcmask 1041408
  %v828 = vsel %vm826, %v818, 0
  %830 = vmatprep.subr.bf16.mxu0 0
  %831 = vmatpush1.bf16.msra.mxu0 %v828
  %832 = vmatprep.subr.bf16.mxu0 0
  %833 = vmatpush1.bf16.msra.mxu0 0
  %834 = vmatprep.subr.bf16.mxu0 0
  %835 = vmatpush1.bf16.msra.mxu0 0
  %836 = vmatprep.subr.bf16.mxu0 0
  %837 = vmatpush1.bf16.msra.mxu0 0
  %838 = vmatprep.subr.bf16.mxu0 0
  %839 = vmatpush1.bf16.msra.mxu0 0
  %840 = vmatprep.subr.bf16.mxu0 0
  %841 = vmatpush1.bf16.msra.mxu0 0
  %842 = vmatprep.subr.bf16.mxu0 0
  %843 = vmatpush1.bf16.msra.mxu0 0
  %844 = vmatprep.subr.bf16.mxu0 0
  %845 = vmatpush1.bf16.msra.mxu0 0
  %846 = vmatprep.subr.bf16.mxu0 0
  %847 = vmatpush1.bf16.msra.mxu0 0
  %848 = vmatprep.subr.bf16.mxu0 0
  %849 = vmatpush1.bf16.msra.mxu0 0
  %850 = vmatprep.subr.bf16.mxu0 0
  %851 = vmatpush1.bf16.msra.mxu0 0
  %852 = vmatprep.subr.bf16.mxu0 0
  %853 = vmatpush1.bf16.msra.mxu0 0
  %854 = vmatprep.subr.bf16.mxu0 0
  %855 = vmatpush1.bf16.msra.mxu0 0
  %856 = vmatprep.subr.bf16.mxu0 0
  %857 = vmatpush1.bf16.msra.mxu0 0
  %858 = vmatprep.subr.bf16.mxu0 0
  %859 = vmatpush1.bf16.msra.mxu0 0
  %860 = vmatprep.subr.bf16.mxu0 0
  %861 = vmatpush1.bf16.msra.mxu0 0
  %862 = vmatprep.mubr.bf16.mxu0 0
  %863 = vmatmul.mubr.bf16.gmra.mrb[0].mxu0 %v821
  %v864 = vpop.f32.mrb[0].mxu0
  %v865 = vadd.f32 0.0, %v864
  %v866 = vpop.f32.mrb[0].mxu0
  %v867 = vpop.f32.mrb[0].mxu0
  %v868 = vadd.f32 0.0, %v867
  %v869 = vpop.f32.mrb[0].mxu0
  %870 = vmatprep.mubr.bf16.mxu0 0
  %871 = vmatmul.mubr.bf16.gmra.mrb[0].mxu0 %v824
  %v872 = vpop.f32.mrb[0].mxu0
  %v873 = vadd.f32 0.0, %v872
  %v874 = vpop.f32.mrb[0].mxu0
  %v875 = vpop.f32.mrb[0].mxu0
  %v876 = vadd.f32 0.0, %v875
  %v877 = vpop.f32.mrb[0].mxu0
  %878 = vdwg.mxu0
  %v879 = vmax.f32 %v865, 1.0
  %v880 = vmax.f32 %v868, 1.0
  %v881 = vmax.f32 %v873, 1.0
  %v882 = vmax.f32 %v876, 1.0
  %v883 = vrcp.pop %v879
  %v884 = vmul.f32 %v787, %v883
  %v885 = vrcp.pop %v880
  %v886 = vmul.f32 %v793, %v885
  %v887 = vrcp.pop %v881
  %v888 = vmul.f32 %v799, %v887
  %v889 = vrcp.pop %v882
  %v890 = vmul.f32 %v805, %v889
  %vm891 = vcmask 130048
  %892 = vst.msk [vmem:[%s4] sm:$0xff] %vm891, %v884
  %893 = vst.msk [vmem:[%s4 + $0x8] sm:$0xff] %vm891, %v886
  %894 = vst.msk [vmem:[%s4 + $0x10] sm:$0xff] %vm891, %v888
  %vm895 = vcmask 122880
  %896 = vst.msk [vmem:[%s4 + $0x18] sm:$0x1] %vm895, %v890
  // Predicated region
  $region18: #{tpu_custom_call.1} parent=0 // pred_check
    _
  $region19: #{tpu_custom_call.1} parent=0 // pred_check_branch
    %898 = sbr.rel (0) target = $region21
  $region20: #{tpu_custom_call.1} parent=0 // pred_region
    _
  $region21: #{tpu_custom_call.1} parent=0 // pred_fallthru
    _
  // Predicated region
  $region22: #{tpu_custom_call.1} parent=0 // pred_check
    _
  $region23: #{tpu_custom_call.1} parent=0 // pred_check_branch
    %900 = sbr.rel (0) target = $region25
  $region24: #{tpu_custom_call.1} parent=0 // pred_region
    _
  $region25: #{tpu_custom_call.1} parent=0 // pred_fallthru
    _

</llo_original>
